<compile_context>
chip_gen: v5e
topology: v5e:2x2
jax: 0.10.0
libtpu: 0.0.40
codegen_flags: <defaults>
</compile_context>

<pallas_src>
import functools
import math

import jax
import jax.numpy as jnp
from jax.experimental import pallas as pl
from jax.experimental.pallas import tpu as pltpu

_LANE = 128      # lane-dense feature padding (MXU/lane width on all gens)
_SUBLANE = 8     # sublane multiple for row tiles


def _round_up(v, m):
    return ((v + m - 1) // m) * m


def _pad_axis(a, mult, axis):
    pad = (-a.shape[axis]) % mult
    if pad == 0:
        return a
    widths = [(0, 0)] * a.ndim
    widths[axis] = (0, pad)
    return jnp.pad(a, widths)  # zeros: required for padded K / hidden dims


# ----------------------------------------------------------------------------
# Exact (erf-form) GELU, matching torch.nn.GELU().
# ----------------------------------------------------------------------------
def _erf(z):
    # Abramowitz & Stegun 7.1.26 polynomial, |err| < 1.5e-7 (plus the small
    # error of the EUP approximate reciprocal).
    p = 0.3275911
    a1, a2, a3, a4, a5 = (0.254829592, -0.284496736, 1.421413741,
                          -1.453152027, 1.061405429)
    sgn = jnp.where(z >= 0.0, 1.0, -1.0)
    az = jnp.abs(z)
    # EUP reciprocal: co-issues with MXU work instead of burning VALU cycles.
    t = pl.reciprocal(1.0 + p * az, approx=True)
    poly = ((((a5 * t + a4) * t + a3) * t + a2) * t + a1) * t
    return sgn * (1.0 - poly * jnp.exp(-az * az))


def _gelu_exact(x):
    return 0.5 * x * (1.0 + _erf(x * 0.7071067811865476))


# ----------------------------------------------------------------------------
# Kernel: grid = (M tiles, N tiles).  The hidden activation for the current
# token tile is computed once (n == 0), cached in VMEM scratch, never in HBM.
# ----------------------------------------------------------------------------
def _mlp_kernel(x_ref, w1_ref, b1_ref, w2_ref, b2_ref, o_ref, h_ref):
    @pl.when(pl.program_id(1) == 0)
    def _():
        h = jnp.dot(x_ref[...], w1_ref[...], preferred_element_type=jnp.float32)
        h = _gelu_exact(h + b1_ref[...])
        h_ref[...] = h.astype(h_ref.dtype)

    o = jnp.dot(h_ref[...], w2_ref[...], preferred_element_type=jnp.float32)
    o_ref[...] = (o + b2_ref[...]).astype(o_ref.dtype)


# ----------------------------------------------------------------------------
# VMEM budget / tile selection (generation-aware).
# ----------------------------------------------------------------------------
def _vmem_budget_bytes():
    try:
        cap = int(pltpu.get_tpu_info().vmem_capacity_bytes)
    except Exception:
        cap = 64 * 1024 * 1024  # smallest per-TensorCore VMEM (v7x)
    # Leave headroom for Mosaic internal scratch / matmul temporaries:
    # ~96 MiB on 128 MiB parts (v5e/v6e), ~48 MiB on v7x.
    return min(cap * 3 // 4, 100 * 1024 * 1024)


def _choose_tiles(M8, Kp, Hp, Np, csize, osize, budget):
    # Output-feature tile for fc2: keep all of Np resident unless w2 is big.
    tn = Np
    while tn > _LANE and 2 * Hp * tn * csize > budget // 4:
        tn = _round_up(max(_LANE, tn // 2), _LANE)
    n_steps = pl.cdiv(Np, tn)
    w2_bufs = 1 if n_steps == 1 else 2

    def vmem_usage(tm):
        u = Kp * Hp * csize + Hp * 4                   # w1 + b1 (single buffer)
        u += w2_bufs * (Hp * tn * csize + tn * 4)      # w2 + b2
        u += 2 * tm * Kp * csize                       # x tile (double buffer)
        u += 2 * tm * tn * osize                       # out tile (double buffer)
        u += tm * Hp * csize                           # hidden scratch
        u += tm * Hp * 4 + tm * tn * 4                 # f32 matmul temporaries
        return u

    tm = 512                                           # big token tile if it fits
    while tm > _SUBLANE and vmem_usage(tm) > budget:
        tm //= 2
    tm = max(_SUBLANE, min(tm, M8))
    tm = (tm // _SUBLANE) * _SUBLANE
    # Keep >= 2 token tiles so both TensorCores of a dual-core chip (v7x)
    # get work via the "parallel" M axis.
    if M8 > _SUBLANE and pl.cdiv(M8, tm) < 2:
        tm = _round_up(pl.cdiv(M8, 2), _SUBLANE)
    return tm, tn


# ----------------------------------------------------------------------------
# Parameter preparation (hoisted out of the per-call hot path).
# ----------------------------------------------------------------------------
def prepare_mlp_params(w1, b1, w2, b2, compute_dtype=jnp.bfloat16):
    """Transpose / zero-pad / cast fc1+fc2 parameters ONCE.

    PyTorch nn.Linear layout: w1 (hidden, in), b1 (hidden,), w2 (out, hidden),
    b2 (out,).  compute_dtype is the MXU operand dtype (bf16 recommended on
    v6e/v7x; accumulation is always f32).
    """
    hidden, din = w1.shape
    dout = w2.shape[0]
    w1p = _pad_axis(_pad_axis(jnp.asarray(w1).T, _LANE, 0), _LANE, 1).astype(compute_dtype)
    w2p = _pad_axis(_pad_axis(jnp.asarray(w2).T, _LANE, 0), _LANE, 1).astype(compute_dtype)
    b1p = _pad_axis(jnp.asarray(b1).reshape(1, hidden), _LANE, 1).astype(jnp.float32)
    b2p = _pad_axis(jnp.asarray(b2).reshape(1, dout), _LANE, 1).astype(jnp.float32)
    return dict(w1p=w1p, b1p=b1p, w2p=w2p, b2p=b2p,
                in_features=din, out_features=dout)


@functools.partial(jax.jit, static_argnames=("out_features",))
def _mlp_forward_padded(x, w1p, b1p, w2p, b2p, *, out_features):
    *lead, din = x.shape
    M = math.prod(lead) if lead else 1
    Kp, Hp = w1p.shape
    Np = w2p.shape[1]
    cdtype = w1p.dtype
    csize = jnp.dtype(cdtype).itemsize
    osize = jnp.dtype(x.dtype).itemsize

    # Pad token rows only to a sublane multiple (the grid handles the ragged
    # last tile); zero-pad the feature dim to Kp (required for correctness).
    x2 = _pad_axis(_pad_axis(x.reshape(M, din), _LANE, 1), _SUBLANE, 0).astype(cdtype)
    M8 = x2.shape[0]

    budget = _vmem_budget_bytes()
    tm, tn = _choose_tiles(M8, Kp, Hp, Np, csize, osize, budget)
    grid = (pl.cdiv(M8, tm), pl.cdiv(Np, tn))

    # Constant-index operands: single buffer.  w2/b2 get double buffers only
    # when the N axis actually streams them.
    w1_spec = pl.BlockSpec((Kp, Hp), lambda i, n: (0, 0), pipeline_mode=pl.Buffered(1))
    b1_spec = pl.BlockSpec((1, Hp), lambda i, n: (0, 0), pipeline_mode=pl.Buffered(1))
    if grid[1] == 1:
        w2_spec = pl.BlockSpec((Hp, tn), lambda i, n: (0, n), pipeline_mode=pl.Buffered(1))
        b2_spec = pl.BlockSpec((1, tn), lambda i, n: (0, n), pipeline_mode=pl.Buffered(1))
    else:
        w2_spec = pl.BlockSpec((Hp, tn), lambda i, n: (0, n))
        b2_spec = pl.BlockSpec((1, tn), lambda i, n: (0, n))

    cost = pl.CostEstimate(
        flops=int(2 * M8 * (Kp * Hp + Hp * Np)),
        transcendentals=int(2 * M8 * Hp),  # exp + approx reciprocal per GELU
        bytes_accessed=int(M8 * Kp * csize + Kp * Hp * csize + Hp * 4
                           + grid[0] * (Hp * Np * csize + Np * 4)
                           + M8 * Np * osize),
    )

    # TODO(synk): an additional K-reduction grid axis over the hidden dim
    # (f32 accumulator scratch, pl.when init/finalize) would be needed only if
    # a single (Kp, Hp) fc1 weight no longer fits VMEM; not required at MViT
    # sizes once operands are bf16 and weights are single-buffered.
    out = pl.pallas_call(
        _mlp_kernel,
        out_shape=jax.ShapeDtypeStruct((M8, Np), x.dtype),
        grid_spec=pltpu.PrefetchScalarGridSpec(
            num_scalar_prefetch=0,
            grid=grid,
            in_specs=[
                pl.BlockSpec((tm, Kp), lambda i, n: (i, 0)),
                w1_spec,
                b1_spec,
                w2_spec,
                b2_spec,
            ],
            out_specs=pl.BlockSpec((tm, tn), lambda i, n: (i, n)),
            scratch_shapes=[pltpu.VMEM((tm, Hp), cdtype)],
        ),
        compiler_params=pltpu.CompilerParams(
            dimension_semantics=("parallel", "arbitrary"),
            vmem_limit_bytes=int(budget),
        ),
        cost_estimate=cost,
    )(x2, w1p, b1p, w2p, b2p)

    return out[:M, :out_features].reshape(*lead, out_features)


def mlp_forward_prepared(x, params):
    """Hot-path forward: weights already transposed / padded / cast."""
    assert x.shape[-1] == params["in_features"]
    return _mlp_forward_padded(x, params["w1p"], params["b1p"], params["w2p"],
                               params["b2p"], out_features=params["out_features"])


def mlp_forward(x, w1, b1, w2, b2, compute_dtype=jnp.bfloat16):
    """One-shot convenience wrapper (re-pads the weights every call).

    For repeated use, call prepare_mlp_params() once and reuse the result with
    mlp_forward_prepared().
    """
    # TODO(synk): Dropout omitted -- identity for p=0.0 / eval mode; training
    # dropout would need pltpu.prng_* inside the kernel.
    params = prepare_mlp_params(w1, b1, w2, b2, compute_dtype=compute_dtype)
    return mlp_forward_prepared(x, params)


if __name__ == "__main__":
    # Small shapes consistent with the module: tokens (B, S, C).
    B, S = 2, 8
    in_features, hidden_features, out_features = 32, 64, 32

    key = jax.random.PRNGKey(0)
    kx, k1, k2, k3, k4 = jax.random.split(key, 5)
    x = jax.random.normal(kx, (B, S, in_features), dtype=jnp.float32)

    # PyTorch nn.Linear default init: U(-1/sqrt(fan_in), 1/sqrt(fan_in)).
    lim1 = 1.0 / math.sqrt(in_features)
    w1 = jax.random.uniform(k1, (hidden_features, in_features), jnp.float32, -lim1, lim1)
    b1 = jax.random.uniform(k2, (hidden_features,), jnp.float32, -lim1, lim1)
    lim2 = 1.0 / math.sqrt(hidden_features)
    w2 = jax.random.uniform(k3, (out_features, hidden_features), jnp.float32, -lim2, lim2)
    b2 = jax.random.uniform(k4, (out_features,), jnp.float32, -lim2, lim2)

    # Plain-JAX reference (exact erf GELU, matching torch.nn.GELU()).
    hp = jax.lax.Precision.HIGHEST
    h_ref = jnp.einsum("bsd,hd->bsh", x, w1, precision=hp) + b1
    h_ref = jax.nn.gelu(h_ref, approximate=False)
    ref = jnp.einsum("bsh,oh->bso", h_ref, w2, precision=hp) + b2

    # Default bf16-operand path (native MXU path on v6e/v7x, f32 accumulation).
    params_bf16 = prepare_mlp_params(w1, b1, w2, b2, compute_dtype=jnp.bfloat16)
    out_bf16 = jax.block_until_ready(mlp_forward_prepared(x, params_bf16))
    assert out_bf16.shape == ref.shape, (out_bf16.shape, ref.shape)
    assert jnp.allclose(out_bf16, ref, atol=2e-2, rtol=2e-2), \
        float(jnp.max(jnp.abs(out_bf16 - ref)))

    # f32-operand path: tight numerics check of the kernel structure itself.
    params_f32 = prepare_mlp_params(w1, b1, w2, b2, compute_dtype=jnp.float32)
    out_f32 = jax.block_until_ready(mlp_forward_prepared(x, params_f32))
    assert out_f32.shape == ref.shape, (out_f32.shape, ref.shape)
    assert jnp.allclose(out_f32, ref, atol=5e-3, rtol=5e-3), \
        float(jnp.max(jnp.abs(out_f32 - ref)))

    print("KERNEL_OK")
</pallas_src>

<mosaic_0001>
module attributes {stable_mosaic.version = 11 : i64} {
  func.func @_mlp_kernel(%arg0: i32, %arg1: i32, %arg2: memref<8x128xbf16, #tpu.memory_space<vmem>>, %arg3: memref<128x128xbf16, #tpu.memory_space<vmem>>, %arg4: memref<1x128xf32, #tpu.memory_space<vmem>>, %arg5: memref<128x128xbf16, #tpu.memory_space<vmem>>, %arg6: memref<1x128xf32, #tpu.memory_space<vmem>>, %arg7: memref<8x128xf32, #tpu.memory_space<vmem>>, %arg8: memref<8x128xbf16, #tpu.memory_space<vmem>>) attributes {dimension_semantics = [#tpu.dimension_semantics<parallel>, #tpu.dimension_semantics<arbitrary>], iteration_bounds = array<i64: 2, 1>, scalar_prefetch = 0 : i64, scratch_operands = 1 : i64, tpu.core_type = #tpu.core_type<tc>, window_params = [{transform_indices = @transform_0, window_bounds = array<i64: 8, 128>}, {pipeline_mode = #tpu.pipeline_mode<synchronous>, transform_indices = @transform_1, window_bounds = array<i64: 128, 128>}, {pipeline_mode = #tpu.pipeline_mode<synchronous>, transform_indices = @transform_2, window_bounds = array<i64: 1, 128>}, {pipeline_mode = #tpu.pipeline_mode<synchronous>, transform_indices = @transform_3, window_bounds = array<i64: 128, 128>}, {pipeline_mode = #tpu.pipeline_mode<synchronous>, transform_indices = @transform_4, window_bounds = array<i64: 1, 128>}, {transform_indices = @transform_5, window_bounds = array<i64: 8, 128>}]} {
    %c0_i32 = arith.constant 0 : i32
    %0 = arith.cmpi eq, %arg1, %c0_i32 : i32
    %1 = arith.extui %0 : i1 to i32
    %c0_i32_0 = arith.constant 0 : i32
    %2 = arith.cmpi ne, %1, %c0_i32_0 : i32
    scf.if %2 {
      %c0_8 = arith.constant 0 : index
      %c0_9 = arith.constant 0 : index
      %10 = vector.load %arg2[%c0_8, %c0_9] : memref<8x128xbf16, #tpu.memory_space<vmem>>, vector<8x128xbf16>
      %c0_10 = arith.constant 0 : index
      %c0_11 = arith.constant 0 : index
      %11 = vector.load %arg3[%c0_10, %c0_11] : memref<128x128xbf16, #tpu.memory_space<vmem>>, vector<128x128xbf16>
      %cst_12 = arith.constant dense<0.000000e+00> : vector<8x128xf32>
      %12 = tpu.matmul %10, %11, %cst_12 {dimension_numbers = #tpu.dot_dimension_numbers<[1], [0], [0], [1], [0, 0, 1, 1], [], []>} : vector<8x128xbf16>, vector<128x128xbf16>, vector<8x128xf32> -> vector<8x128xf32>
      %c0_13 = arith.constant 0 : index
      %c0_14 = arith.constant 0 : index
      %13 = vector.load %arg4[%c0_13, %c0_14] : memref<1x128xf32, #tpu.memory_space<vmem>>, vector<1x128xf32>
      %14 = vector.broadcast %13 : vector<1x128xf32> to vector<8x128xf32>
      %15 = arith.addf %12, %14 : vector<8x128xf32>
      %cst_15 = arith.constant 5.000000e-01 : f32
      %16 = vector.broadcast %cst_15 : f32 to vector<8x128xf32>
      %17 = arith.mulf %16, %15 : vector<8x128xf32>
      %cst_16 = arith.constant 0.707106769 : f32
      %18 = vector.broadcast %cst_16 : f32 to vector<8x128xf32>
      %19 = arith.mulf %15, %18 : vector<8x128xf32>
      %cst_17 = arith.constant 0.000000e+00 : f32
      %20 = vector.broadcast %cst_17 : f32 to vector<8x128xf32>
      %21 = arith.cmpf oge, %19, %20 : vector<8x128xf32>
      %cst_18 = arith.constant 1.000000e+00 : f32
      %cst_19 = arith.constant -1.000000e+00 : f32
      %22 = vector.broadcast %cst_18 : f32 to vector<8x128xf32>
      %23 = vector.broadcast %cst_19 : f32 to vector<8x128xf32>
      %24 = arith.select %21, %22, %23 : vector<8x128xi1>, vector<8x128xf32>
      %25 = math.absf %19 : vector<8x128xf32>
      %cst_20 = arith.constant 0.327591091 : f32
      %26 = vector.broadcast %cst_20 : f32 to vector<8x128xf32>
      %27 = arith.mulf %26, %25 : vector<8x128xf32>
      %cst_21 = arith.constant 1.000000e+00 : f32
      %28 = vector.broadcast %cst_21 : f32 to vector<8x128xf32>
      %29 = arith.addf %28, %27 : vector<8x128xf32>
      %30 = tpu.reciprocal %29 {approx = true} : vector<8x128xf32> -> vector<8x128xf32>
      %cst_22 = arith.constant 1.06140542 : f32
      %31 = vector.broadcast %cst_22 : f32 to vector<8x128xf32>
      %32 = arith.mulf %31, %30 : vector<8x128xf32>
      %cst_23 = arith.constant -1.45315206 : f32
      %33 = vector.broadcast %cst_23 : f32 to vector<8x128xf32>
      %34 = arith.addf %32, %33 : vector<8x128xf32>
      %35 = arith.mulf %34, %30 : vector<8x128xf32>
      %cst_24 = arith.constant 1.42141378 : f32
      %36 = vector.broadcast %cst_24 : f32 to vector<8x128xf32>
      %37 = arith.addf %35, %36 : vector<8x128xf32>
      %38 = arith.mulf %37, %30 : vector<8x128xf32>
      %cst_25 = arith.constant -0.284496725 : f32
      %39 = vector.broadcast %cst_25 : f32 to vector<8x128xf32>
      %40 = arith.addf %38, %39 : vector<8x128xf32>
      %41 = arith.mulf %40, %30 : vector<8x128xf32>
      %cst_26 = arith.constant 0.254829586 : f32
      %42 = vector.broadcast %cst_26 : f32 to vector<8x128xf32>
      %43 = arith.addf %41, %42 : vector<8x128xf32>
      %44 = arith.mulf %43, %30 : vector<8x128xf32>
      %cst_27 = arith.constant 0.000000e+00 : f32
      %45 = vector.broadcast %cst_27 : f32 to vector<8x128xf32>
      %46 = arith.subf %45, %25 : vector<8x128xf32>
      %47 = arith.mulf %46, %25 : vector<8x128xf32>
      %48 = math.exp %47 : vector<8x128xf32>
      %49 = arith.mulf %44, %48 : vector<8x128xf32>
      %cst_28 = arith.constant 1.000000e+00 : f32
      %50 = vector.broadcast %cst_28 : f32 to vector<8x128xf32>
      %51 = arith.subf %50, %49 : vector<8x128xf32>
      %52 = arith.mulf %24, %51 : vector<8x128xf32>
      %cst_29 = arith.constant 1.000000e+00 : f32
      %53 = vector.broadcast %cst_29 : f32 to vector<8x128xf32>
      %54 = arith.addf %53, %52 : vector<8x128xf32>
      %55 = arith.mulf %17, %54 : vector<8x128xf32>
      %56 = arith.truncf %55 : vector<8x128xf32> to vector<8x128xbf16>
      %c0_30 = arith.constant 0 : index
      %c0_31 = arith.constant 0 : index
      %57 = vector.load %arg8[%c0_30, %c0_31] : memref<8x128xbf16, #tpu.memory_space<vmem>>, vector<8x128xbf16>
      tpu.vector_store %arg8[%c0_30, %c0_31], %56 {strides = array<i32>} : memref<8x128xbf16, #tpu.memory_space<vmem>>, vector<8x128xbf16>,
    } else {
    }
    %c0 = arith.constant 0 : index
    %c0_1 = arith.constant 0 : index
    %3 = vector.load %arg8[%c0, %c0_1] : memref<8x128xbf16, #tpu.memory_space<vmem>>, vector<8x128xbf16>
    %c0_2 = arith.constant 0 : index
    %c0_3 = arith.constant 0 : index
    %4 = vector.load %arg5[%c0_2, %c0_3] : memref<128x128xbf16, #tpu.memory_space<vmem>>, vector<128x128xbf16>
    %cst = arith.constant dense<0.000000e+00> : vector<8x128xf32>
    %5 = tpu.matmul %3, %4, %cst {dimension_numbers = #tpu.dot_dimension_numbers<[1], [0], [0], [1], [0, 0, 1, 1], [], []>} : vector<8x128xbf16>, vector<128x128xbf16>, vector<8x128xf32> -> vector<8x128xf32>
    %c0_4 = arith.constant 0 : index
    %c0_5 = arith.constant 0 : index
    %6 = vector.load %arg6[%c0_4, %c0_5] : memref<1x128xf32, #tpu.memory_space<vmem>>, vector<1x128xf32>
    %7 = vector.broadcast %6 : vector<1x128xf32> to vector<8x128xf32>
    %8 = arith.addf %5, %7 : vector<8x128xf32>
    %c0_6 = arith.constant 0 : index
    %c0_7 = arith.constant 0 : index
    %9 = vector.load %arg7[%c0_6, %c0_7] : memref<8x128xf32, #tpu.memory_space<vmem>>, vector<8x128xf32>
    tpu.vector_store %arg7[%c0_6, %c0_7], %8 {strides = array<i32>} : memref<8x128xf32, #tpu.memory_space<vmem>>, vector<8x128xf32>,
    return
  }
  func.func @transform_0(%arg0: i32, %arg1: i32) -> (i32, i32) {
    %c0_i32 = arith.constant 0 : i32
    %c0_i32_0 = arith.constant 0 : i32
    return %arg0, %c0_i32 : i32, i32
  }
  func.func @transform_1(%arg0: i32, %arg1: i32) -> (i32, i32) {
    %c0_i32 = arith.constant 0 : i32
    %c0_i32_0 = arith.constant 0 : i32
    %c0_i32_1 = arith.constant 0 : i32
    return %c0_i32, %c0_i32_0 : i32, i32
  }
  func.func @transform_2(%arg0: i32, %arg1: i32) -> (i32, i32) {
    %c0_i32 = arith.constant 0 : i32
    %c0_i32_0 = arith.constant 0 : i32
    %c0_i32_1 = arith.constant 0 : i32
    return %c0_i32, %c0_i32_0 : i32, i32
  }
  func.func @transform_3(%arg0: i32, %arg1: i32) -> (i32, i32) {
    %c0_i32 = arith.constant 0 : i32
    %c0_i32_0 = arith.constant 0 : i32
    return %c0_i32, %arg1 : i32, i32
  }
  func.func @transform_4(%arg0: i32, %arg1: i32) -> (i32, i32) {
    %c0_i32 = arith.constant 0 : i32
    %c0_i32_0 = arith.constant 0 : i32
    return %c0_i32, %arg1 : i32, i32
  }
  func.func @transform_5(%arg0: i32, %arg1: i32) -> (i32, i32) {
    %c0_i32 = arith.constant 0 : i32
    return %arg0, %arg1 : i32, i32
  }
}

</mosaic_0001>

<llo_original>
// kernel: _mlp_forward_padded.1
$region0: #{_mlp_forward_padded.1}
  #allocation0 [shape = 'u32[]', space=smem, size = 0x4, offset = 0x4, fixed_abs, tag = 'smem constant byte address 0x4 - core index']
  #allocation1 [shape = 'u32[72,128]{1,0:T(1,128)}', space=vmem, size = 0x9000, scoped, tag = 'internal scratch']
  #allocation2 [shape = 'bf16[8,128]{1,0:T(8,128)(2,1)}', space=vmem, size = 0x800, scoped, tag = 'scratch operand']
  %s0 = inlined_call_operand.vmem [shape: bf16[16,128], index: 0, kind: input, shape index: {}]
  %s1 = inlined_call_operand.hbm [shape: bf16[128,128], index: 1, kind: input, shape index: {}]
  %s2 = inlined_call_operand.vmem [shape: f32[1,128], index: 2, kind: input, shape index: {}]
  %s3 = inlined_call_operand.hbm [shape: bf16[128,128], index: 3, kind: input, shape index: {}]
  %s4 = inlined_call_operand.vmem [shape: f32[1,128], index: 4, kind: input, shape index: {}]
  %s5 = inlined_call_operand.vmem [shape: f32[16,128], index: 5, kind: output, shape index: {}]
  %s6 = sld [smem:[#allocation0]]
  $region65: #{_mlp_forward_padded.1} parent=0
    _
  %s8 = ssub.s32 1, %s6
  %s9 = scalar_select 0, %s8, %s6
  $region1: #{_mlp_forward_padded.1} parent=0
    #allocation3 [shape = 'u8[32768]{0}', space=vmem, size = 0x8000, scoped, tag = 'input window, operand 1, single buffered']
    #allocation4 [shape = 's32[2]{0}', space=sflag, size = 0x8, scoped, tag = 'scoped memory for _mlp_forward_padded.1']
    #allocation5 [shape = 'u8[32768]{0}', space=vmem, size = 0x8000, scoped, tag = 'input window, operand 3, single buffered']
    #allocation6 [shape = 's32[1]{0}', space=sflag, size = 0x4, scoped, tag = 'scoped memory for _mlp_forward_padded.1']
    %10 = vsyncpa [#allocation4], 0
    %11 = vsyncpa [#allocation6], 0
    loop: start=0, step=1, limit=4
    $region2: #{_mlp_forward_padded.1} parent=1 // loop_pre_header
      _
    $region3: #{_mlp_forward_padded.1} parent=1 // loop_header
      %s13 = sphi 0, %s17
      %p14 = scmp.ge.s32.totalorder %s13, 4
      %s20 = sphi 0, %s32
      %s21 = sphi 0, %s28
      %s22 = sphi 0, %s20
      %s23 = sphi 0, %s21
      %s24 = sphi 0, %s22
      %s25 = sphi 0, %s23
      %s35 = sphi 0, %s37
      %s38 = sphi 0, %s35
      %s39 = sphi 0, %s38
      %s55 = sphi 0, %s39
      %s59 = sphi 0, %s59
      %s61 = sphi 0, %s59
      %s62 = sphi 0, %s61
      %s76 = sphi 0, %s62
      %s80 = sphi 0, %s80
      %s82 = sphi 0, %s80
      %s83 = sphi 0, %s82
      %s97 = sphi 0, %s83
      %s103 = sphi 0, %s105
      %s106 = sphi 0, %s103
      %s107 = sphi 0, %s106
      %s123 = sphi 0, %s107
      %s129 = sphi 0, %s131
      %s132 = sphi 0, %s129
      %s133 = sphi 0, %s132
      %s149 = sphi 0, %s133
      %s157 = sphi 0, %s159
      %s160 = sphi 0, %s157
      %s161 = sphi 0, %s160
      %s177 = sphi 0, %s161
    $region4: #{_mlp_forward_padded.1} parent=1 // loop_header_branch
      %16 = sbr.rel (%p14) target = $region8
    $region5: #{_mlp_forward_padded.1} parent=1 // loop_body
      %s18 = ssub.s32 %s13, 1
      %s19 = ssub.s32 %s13, 2
      %s26 = sadd.s32 1, %s21
      %p27 = scmp.ge.s32.totalorder %s26, 1
      %s28 = scalar_select %p27, 0, %s26
      %s29 = sadd.s32 1, %s20
      %s30 = scalar_select %p27, %s29, %s20
      %p31 = scmp.ge.s32.totalorder %s30, 2
      %s32 = scalar_select %p31, 0, %s30
      %s33 = ssub.s32 %s20, %s32
      %p34 = scmp.eq.s32.totalorder %s33, 0
      %s36 = sadd.s32 %s35, 1
      %s37 = scalar_select %p34, %s35, %s36
      %p40 = pneg %p34
      %p41 = scmp.eq.s32.totalorder %s13, 1
      %p42 = por %p40, %p41
      %p43 = scmp.ne.s32.totalorder %s35, %s38
      %p44 = scmp.eq.s32.totalorder %s13, 0
      %p45 = por %p43, %p44
      %p46 = scmp.ne.s32.totalorder %s35, %s38
      %p47 = scmp.eq.s32.totalorder %s18, 1
      %p48 = por %p46, %p47
      %p49 = scmp.ne.s32.totalorder %s38, %s39
      %p50 = scmp.eq.s32.totalorder %s18, 0
      %p51 = por %p49, %p50
      %p52 = scmp.ne.s32.totalorder %s38, %s39
      %p53 = scmp.eq.s32.totalorder %s19, 1
      %p54 = por %p52, %p53
      %p56 = scmp.ne.s32.totalorder %s39, %s55
      %p57 = scmp.eq.s32.totalorder %s19, 0
      %p58 = por %p56, %p57
      %s60 = sadd.s32 %s59, 1
      %p63 = scmp.eq.s32.totalorder %s13, 1
      %p64 = scmp.ne.s32.totalorder %s59, %s61
      %p65 = scmp.eq.s32.totalorder %s13, 0
      %p66 = por %p64, %p65
      %p67 = scmp.ne.s32.totalorder %s59, %s61
      %p68 = scmp.eq.s32.totalorder %s18, 1
      %p69 = por %p67, %p68
      %p70 = scmp.ne.s32.totalorder %s61, %s62
      %p71 = scmp.eq.s32.totalorder %s18, 0
      %p72 = por %p70, %p71
      %p73 = scmp.ne.s32.totalorder %s61, %s62
      %p74 = scmp.eq.s32.totalorder %s19, 1
      %p75 = por %p73, %p74
      %p77 = scmp.ne.s32.totalorder %s62, %s76
      %p78 = scmp.eq.s32.totalorder %s19, 0
      %p79 = por %p77, %p78
      %s81 = sadd.s32 %s80, 1
      %p84 = scmp.eq.s32.totalorder %s13, 1
      %p85 = scmp.ne.s32.totalorder %s80, %s82
      %p86 = scmp.eq.s32.totalorder %s13, 0
      %p87 = por %p85, %p86
      %p88 = scmp.ne.s32.totalorder %s80, %s82
      %p89 = scmp.eq.s32.totalorder %s18, 1
      %p90 = por %p88, %p89
      %p91 = scmp.ne.s32.totalorder %s82, %s83
      %p92 = scmp.eq.s32.totalorder %s18, 0
      %p93 = por %p91, %p92
      %p94 = scmp.ne.s32.totalorder %s82, %s83
      %p95 = scmp.eq.s32.totalorder %s19, 1
      %p96 = por %p94, %p95
      %p98 = scmp.ne.s32.totalorder %s83, %s97
      %p99 = scmp.eq.s32.totalorder %s19, 0
      %p100 = por %p98, %p99
      %s101 = ssub.s32 %s21, %s28
      %p102 = scmp.eq.s32.totalorder %s101, 0
      %s104 = sadd.s32 %s103, 1
      %s105 = scalar_select %p102, %s103, %s104
      %p108 = pneg %p102
      %p109 = scmp.eq.s32.totalorder %s13, 1
      %p110 = por %p108, %p109
      %p111 = scmp.ne.s32.totalorder %s103, %s106
      %p112 = scmp.eq.s32.totalorder %s13, 0
      %p113 = por %p111, %p112
      %p114 = scmp.ne.s32.totalorder %s103, %s106
      %p115 = scmp.eq.s32.totalorder %s18, 1
      %p116 = por %p114, %p115
      %p117 = scmp.ne.s32.totalorder %s106, %s107
      %p118 = scmp.eq.s32.totalorder %s18, 0
      %p119 = por %p117, %p118
      %p120 = scmp.ne.s32.totalorder %s106, %s107
      %p121 = scmp.eq.s32.totalorder %s19, 1
      %p122 = por %p120, %p121
      %p124 = scmp.ne.s32.totalorder %s107, %s123
      %p125 = scmp.eq.s32.totalorder %s19, 0
      %p126 = por %p124, %p125
      %s127 = ssub.s32 %s21, %s28
      %p128 = scmp.eq.s32.totalorder %s127, 0
      %s130 = sadd.s32 %s129, 1
      %s131 = scalar_select %p128, %s129, %s130
      %p134 = pneg %p128
      %p135 = scmp.eq.s32.totalorder %s13, 1
      %p136 = por %p134, %p135
      %p137 = scmp.ne.s32.totalorder %s129, %s132
      %p138 = scmp.eq.s32.totalorder %s13, 0
      %p139 = por %p137, %p138
      %p140 = scmp.ne.s32.totalorder %s129, %s132
      %p141 = scmp.eq.s32.totalorder %s18, 1
      %p142 = por %p140, %p141
      %p143 = scmp.ne.s32.totalorder %s132, %s133
      %p144 = scmp.eq.s32.totalorder %s18, 0
      %p145 = por %p143, %p144
      %p146 = scmp.ne.s32.totalorder %s132, %s133
      %p147 = scmp.eq.s32.totalorder %s19, 1
      %p148 = por %p146, %p147
      %p150 = scmp.ne.s32.totalorder %s133, %s149
      %p151 = scmp.eq.s32.totalorder %s19, 0
      %p152 = por %p150, %p151
      %s153 = ssub.s32 %s20, %s32
      %s154 = ssub.s32 %s21, %s28
      %s155 = sor.u32 %s153, %s154
      %p156 = scmp.eq.s32.totalorder %s155, 0
      %s158 = sadd.s32 %s157, 1
      %s159 = scalar_select %p156, %s157, %s158
      %p162 = pneg %p156
      %p163 = scmp.eq.s32.totalorder %s13, 1
      %p164 = por %p162, %p163
      %p165 = scmp.ne.s32.totalorder %s157, %s160
      %p166 = scmp.eq.s32.totalorder %s13, 0
      %p167 = por %p165, %p166
      %p168 = scmp.ne.s32.totalorder %s157, %s160
      %p169 = scmp.eq.s32.totalorder %s18, 1
      %p170 = por %p168, %p169
      %p171 = scmp.ne.s32.totalorder %s160, %s161
      %p172 = scmp.eq.s32.totalorder %s18, 0
      %p173 = por %p171, %p172
      %p174 = scmp.ne.s32.totalorder %s160, %s161
      %p175 = scmp.eq.s32.totalorder %s19, 1
      %p176 = por %p174, %p175
      %p178 = scmp.ne.s32.totalorder %s161, %s177
      %p179 = scmp.eq.s32.totalorder %s19, 0
      %p180 = por %p178, %p179
      %p181 = scmp.le.s32.totalorder 1, %s13
      %p182 = scmp.lt.s32.totalorder %s13, 3
      %p183 = pnand %p181, %p182
      %p184 = pneg %p183
      // Predicated region
      $region9: #{_mlp_forward_padded.1} parent=5 // pred_check
        _
      $region10: #{_mlp_forward_padded.1} parent=5 // pred_check_branch
        %186 = sbr.rel (%p183) target = $region12
      $region11: #{_mlp_forward_padded.1} parent=5 // pred_region
        %s187 = ssub.s32 %s13, 1
        // Predicated region
        $region13: #{_mlp_forward_padded.1} parent=11 // pred_check
          %p188 = pneg %p72
        $region14: #{_mlp_forward_padded.1} parent=11 // pred_check_branch
          %190 = sbr.rel (%p188) target = $region16
        $region15: #{_mlp_forward_padded.1} parent=11 // pred_region
          %192 = vsyncadd [#allocation4], 0
          %s193 = sshll.u32 %s1, 4
          %s194 = int_to_ptr.hbm [resolvable:$true] %s193
          %s195 = sshll.u32 [#allocation3], 4
          %s196 = int_to_ptr.vmem [resolvable:$true] %s195
          %201 = dma.hbm_to_vmem [thread:$0]  %s194, 1024, %s196, [#allocation4], 64, 64, 4
        $region16: #{_mlp_forward_padded.1} parent=11 // pred_fallthru
          _
        // Predicated region
        $region17: #{_mlp_forward_padded.1} parent=11 // pred_check
          %p202 = pneg %p93
        $region18: #{_mlp_forward_padded.1} parent=11 // pred_check_branch
          %204 = sbr.rel (%p202) target = $region20
        $region19: #{_mlp_forward_padded.1} parent=11 // pred_region
          _
        $region20: #{_mlp_forward_padded.1} parent=11 // pred_fallthru
          _
        // Predicated region
        $region21: #{_mlp_forward_padded.1} parent=11 // pred_check
          %p205 = pneg %p119
        $region22: #{_mlp_forward_padded.1} parent=11 // pred_check_branch
          %207 = sbr.rel (%p205) target = $region24
        $region23: #{_mlp_forward_padded.1} parent=11 // pred_region
          %209 = vsyncadd [#allocation6], 0
          %s210 = smul.addr %s23, 4
          %s211 = scalar_lea.hbm %s3, %s210
          %s212 = sshll.u32 %s211, 4
          %s213 = int_to_ptr.hbm [resolvable:$true] %s212
          %s214 = sshll.u32 [#allocation5], 4
          %s215 = int_to_ptr.vmem [resolvable:$true] %s214
          %220 = dma.hbm_to_vmem [thread:$0]  %s213, 1024, %s215, [#allocation6], 64, 64, 4
        $region24: #{_mlp_forward_padded.1} parent=11 // pred_fallthru
          _
        // Predicated region
        $region25: #{_mlp_forward_padded.1} parent=11 // pred_check
          %p221 = pneg %p145
        $region26: #{_mlp_forward_padded.1} parent=11 // pred_check_branch
          %223 = sbr.rel (%p221) target = $region28
        $region27: #{_mlp_forward_padded.1} parent=11 // pred_region
          %p224 = scmp.lt.s32.totalorder %s23, 0
          %s225 = scalar_select %p224, %s23, 0
          %s226 = scalar_lea.vmem %s4, %s225
        $region28: #{_mlp_forward_padded.1} parent=11 // pred_fallthru
          _
      $region12: #{_mlp_forward_padded.1} parent=5 // pred_fallthru
        _
      %p227 = scmp.lt.s32.totalorder %s13, 2
      // Predicated region
      $region29: #{_mlp_forward_padded.1} parent=5 // pred_check
        %p228 = pneg %p227
      $region30: #{_mlp_forward_padded.1} parent=5 // pred_check_branch
        %230 = sbr.rel (%p228) target = $region32
      $region31: #{_mlp_forward_padded.1} parent=5 // pred_region
        // Predicated region
        $region33: #{_mlp_forward_padded.1} parent=31 // pred_check
          %p231 = pneg %p45
        $region34: #{_mlp_forward_padded.1} parent=31 // pred_check_branch
          %233 = sbr.rel (%p231) target = $region36
        $region35: #{_mlp_forward_padded.1} parent=31 // pred_region
          %p234 = scmp.lt.s32.totalorder %s20, 1
          %s235 = scalar_select %p234, %s20, 1
          %s236 = smul.addr %s235, 4
          %s237 = scalar_lea.vmem %s0, %s236
        $region36: #{_mlp_forward_padded.1} parent=31 // pred_fallthru
          _
      $region32: #{_mlp_forward_padded.1} parent=5 // pred_fallthru
        _
      %p238 = scmp.le.s32.totalorder 1, %s13
      %p239 = scmp.lt.s32.totalorder %s13, 3
      %p240 = pnand %p238, %p239
      %p241 = pneg %p240
      // Predicated region
      $region37: #{_mlp_forward_padded.1} parent=5 // pred_check
        _
      $region38: #{_mlp_forward_padded.1} parent=5 // pred_check_branch
        %243 = sbr.rel (%p240) target = $region40
      $region39: #{_mlp_forward_padded.1} parent=5 // pred_region
        %s244 = ssub.s32 %s13, 1
        // Predicated region
        $region41: #{_mlp_forward_padded.1} parent=39 // pred_check
          %p245 = pneg %p72
        $region42: #{_mlp_forward_padded.1} parent=39 // pred_check_branch
          %247 = sbr.rel (%p245) target = $region44
        $region43: #{_mlp_forward_padded.1} parent=39 // pred_region
          %249 = dma.done [#allocation4], 1024
        $region44: #{_mlp_forward_padded.1} parent=39 // pred_fallthru
          _
        // Predicated region
        $region45: #{_mlp_forward_padded.1} parent=39 // pred_check
          %p250 = pneg %p119
        $region46: #{_mlp_forward_padded.1} parent=39 // pred_check_branch
          %252 = sbr.rel (%p250) target = $region48
        $region47: #{_mlp_forward_padded.1} parent=39 // pred_region
          %254 = dma.done [#allocation6], 1024
        $region48: #{_mlp_forward_padded.1} parent=39 // pred_fallthru
          _
        %p255 = scmp.lt.s32.totalorder %s22, 1
        %s256 = scalar_select %p255, %s22, 1
        %s257 = smul.addr %s256, 4
        %s258 = scalar_lea.vmem %s0, %s257
        %p259 = pneg %p51
        %p260 = pneg %p48
        %p261 = pneg %p72
        %p262 = pneg %p69
        %p263 = pneg %p93
        %p264 = pneg %p90
        %p265 = pneg %p119
        %p266 = pneg %p116
        %p267 = scmp.lt.s32.totalorder %s23, 0
        %s268 = scalar_select %p267, %s23, 0
        %s269 = scalar_lea.vmem %s4, %s268
        %p270 = pneg %p145
        %p271 = pneg %p142
        %p272 = pneg %p173
        %p273 = pneg %p170
        %p274 = scmp.lt.s32.totalorder %s22, 1
        %s275 = scalar_select %p274, %s22, 1
        %p276 = scmp.lt.s32.totalorder %s23, 0
        %s277 = scalar_select %p276, %s23, 0
        %s278 = sadd.s32 %s277, %s275
        %s279 = smul.addr %s278, 8
        %s280 = scalar_lea.vmem %s5, %s279
        %p281 = scmp.lt.s32.totalorder %s22, 1
        %s282 = scalar_select %p281, %s22, 1
        %s283 = smul.addr %s282, 4
        %s284 = scalar_lea.vmem %s0, %s283
        %p285 = scmp.lt.s32.totalorder %s23, 0
        %s286 = scalar_select %p285, %s23, 0
        %s287 = scalar_lea.vmem %s4, %s286
        %p288 = scmp.lt.s32.totalorder %s22, 1
        %s289 = scalar_select %p288, %s22, 1
        %p290 = scmp.lt.s32.totalorder %s23, 0
        %s291 = scalar_select %p290, %s23, 0
        %s292 = sadd.s32 %s291, %s289
        %s293 = smul.addr %s292, 8
        %s294 = scalar_lea.vmem %s5, %s293
        %p295 = scmp.eq.s32.totalorder %s23, 0
        // Predicated region
        $region49: #{_mlp_forward_padded.1} parent=39 // pred_check
          %p296 = pneg %p295
        $region50: #{_mlp_forward_padded.1} parent=39 // pred_check_branch
          %298 = sbr.rel (%p296) target = $region52
        $region51: #{_mlp_forward_padded.1} parent=39 // pred_region
          %v299 = vld [vmem:[%s284] sm:$0xf]
          %v300 = vld [vmem:[#allocation3] sm:$0xf]
          %v301 = vld [vmem:[#allocation3 + $0x4] sm:$0xf]
          %v302 = vld [vmem:[#allocation3 + $0x8] sm:$0xf]
          %v303 = vld [vmem:[#allocation3 + $0xc] sm:$0xf]
          %v304 = vld [vmem:[#allocation3 + $0x10] sm:$0xf]
          %v305 = vld [vmem:[#allocation3 + $0x14] sm:$0xf]
          %v306 = vld [vmem:[#allocation3 + $0x18] sm:$0xf]
          %v307 = vld [vmem:[#allocation3 + $0x1c] sm:$0xf]
          %v308 = vld [vmem:[#allocation3 + $0x20] sm:$0xf]
          %v309 = vld [vmem:[#allocation3 + $0x24] sm:$0xf]
          %v310 = vld [vmem:[#allocation3 + $0x28] sm:$0xf]
          %v311 = vld [vmem:[#allocation3 + $0x2c] sm:$0xf]
          %v312 = vld [vmem:[#allocation3 + $0x30] sm:$0xf]
          %v313 = vld [vmem:[#allocation3 + $0x34] sm:$0xf]
          %v314 = vld [vmem:[#allocation3 + $0x38] sm:$0xf]
          %v315 = vld [vmem:[#allocation3 + $0x3c] sm:$0xf]
          %v316 = vld [vmem:[%s2] sm:$0x1]
          %v318 = vperm.slane %v316, 0
          %v336 = vunpack.c.l.b16 %v300
          %v337 = vunpack.c.l.b16 %v301
          %v338 = vunpack.c.l.b16 %v302
          %v339 = vunpack.c.l.b16 %v303
          %v340 = vunpack.c.l.b16 %v304
          %v341 = vunpack.c.l.b16 %v305
          %v342 = vunpack.c.l.b16 %v306
          %v343 = vunpack.c.l.b16 %v307
          %v344 = vunpack.c.l.b16 %v308
          %v345 = vunpack.c.l.b16 %v309
          %v346 = vunpack.c.l.b16 %v310
          %v347 = vunpack.c.l.b16 %v311
          %v348 = vunpack.c.l.b16 %v312
          %v349 = vunpack.c.l.b16 %v313
          %v350 = vunpack.c.l.b16 %v314
          %v351 = vunpack.c.l.b16 %v315
          %v352 = vpack.c.b16 %v337, %v336
          %v353 = vpack.c.b16 %v339, %v338
          %v354 = vpack.c.b16 %v341, %v340
          %v355 = vpack.c.b16 %v343, %v342
          %v356 = vpack.c.b16 %v345, %v344
          %v357 = vpack.c.b16 %v347, %v346
          %v358 = vpack.c.b16 %v349, %v348
          %v359 = vpack.c.b16 %v351, %v350
          %368 = vmatpush.bf16.msra.mxu0 %v359
          %369 = vmatpush.bf16.msra.mxu0 %v358
          %370 = vmatpush.bf16.msra.mxu0 %v357
          %371 = vmatpush.bf16.msra.mxu0 %v356
          %372 = vmatpush.bf16.msra.mxu0 %v355
          %373 = vmatpush.bf16.msra.mxu0 %v354
          %374 = vmatpush.bf16.msra.mxu0 %v353
          %375 = vmatpush.bf16.msra.mxu0 %v352
          %376 = vmatmul.bf16.gmra.mxu0 %v299
          %v377 = vpop.f32.mrf.mxu0
          %v378 = vadd.f32 %v318, %v377
          %v379 = vpop.f32.mrf.mxu0
          %380 = vdwg.mxu0
          %v381 = vmul.f32 %v378, 0.5
          %v382 = vmul.f32 %v378, 0.70710677
          %vm383 = vcmp.ge.f32.partialorder %v382, 0.0
          %v384 = vsel %vm383, 1.0, -1.0
          %v385 = vand.u32 2147483647, %v382
          %v386 = vmul.f32 %v385, 0.3275911
          %v387 = vadd.f32 %v386, 1.0
          %v388 = vrcp.pop %v387
          %v389 = vmul.f32 %v388, 1.0614054
          %v390 = vadd.f32 %v389, -1.4531521
          %v391 = vmul.f32 %v390, %v388
          %v392 = vadd.f32 %v391, 1.4214138
          %v393 = vmul.f32 %v392, %v388
          %v394 = vadd.f32 %v393, -0.28449672
          %v395 = vmul.f32 %v394, %v388
          %v396 = vadd.f32 %v395, 0.2548296
          %v397 = vmul.f32 %v396, %v388
          %v398 = vsub.f32 0.0, %v385
          %v399 = vmul.f32 %v398, %v385
          %v400 = vmul.f32 %v399, 1.442695
          %v401 = vpow.pop %v400
          %v402 = vmul.f32 %v397, %v401
          %v403 = vsub.f32 1.0, %v402
          %v404 = vmul.f32 %v384, %v403
          %v405 = vadd.f32 %v404, 1.0
          %v406 = vmul.f32 %v381, %v405
          %v407 = vpack.c.bf16 %v406, %v406
          %408 = vst [vmem:[#allocation2] sm:$0xf] %v407
        $region52: #{_mlp_forward_padded.1} parent=39 // pred_fallthru
          _
        %v409 = vld [vmem:[#allocation2] sm:$0xf]
        %v410 = vld [vmem:[#allocation5] sm:$0xf]
        %v411 = vld [vmem:[#allocation5 + $0x4] sm:$0xf]
        %v412 = vld [vmem:[#allocation5 + $0x8] sm:$0xf]
        %v413 = vld [vmem:[#allocation5 + $0xc] sm:$0xf]
        %v414 = vld [vmem:[#allocation5 + $0x10] sm:$0xf]
        %v415 = vld [vmem:[#allocation5 + $0x14] sm:$0xf]
        %v416 = vld [vmem:[#allocation5 + $0x18] sm:$0xf]
        %v417 = vld [vmem:[#allocation5 + $0x1c] sm:$0xf]
        %v418 = vld [vmem:[#allocation5 + $0x20] sm:$0xf]
        %v419 = vld [vmem:[#allocation5 + $0x24] sm:$0xf]
        %v420 = vld [vmem:[#allocation5 + $0x28] sm:$0xf]
        %v421 = vld [vmem:[#allocation5 + $0x2c] sm:$0xf]
        %v422 = vld [vmem:[#allocation5 + $0x30] sm:$0xf]
        %v423 = vld [vmem:[#allocation5 + $0x34] sm:$0xf]
        %v424 = vld [vmem:[#allocation5 + $0x38] sm:$0xf]
        %v425 = vld [vmem:[#allocation5 + $0x3c] sm:$0xf]
        %v426 = vld [vmem:[%s287] sm:$0x1]
        %v428 = vperm.slane %v426, 0
        %v446 = vunpack.c.l.b16 %v410
        %v447 = vunpack.c.l.b16 %v411
        %v448 = vunpack.c.l.b16 %v412
        %v449 = vunpack.c.l.b16 %v413
        %v450 = vunpack.c.l.b16 %v414
        %v451 = vunpack.c.l.b16 %v415
        %v452 = vunpack.c.l.b16 %v416
        %v453 = vunpack.c.l.b16 %v417
        %v454 = vunpack.c.l.b16 %v418
        %v455 = vunpack.c.l.b16 %v419
        %v456 = vunpack.c.l.b16 %v420
        %v457 = vunpack.c.l.b16 %v421
        %v458 = vunpack.c.l.b16 %v422
        %v459 = vunpack.c.l.b16 %v423
        %v460 = vunpack.c.l.b16 %v424
        %v461 = vunpack.c.l.b16 %v425
        %v462 = vpack.c.b16 %v447, %v446
        %v463 = vpack.c.b16 %v449, %v448
        %v464 = vpack.c.b16 %v451, %v450
        %v465 = vpack.c.b16 %v453, %v452
        %v466 = vpack.c.b16 %v455, %v454
        %v467 = vpack.c.b16 %v457, %v456
        %v468 = vpack.c.b16 %v459, %v458
        %v469 = vpack.c.b16 %v461, %v460
        %478 = vmatpush.bf16.msra.mxu0 %v469
        %479 = vmatpush.bf16.msra.mxu0 %v468
        %480 = vmatpush.bf16.msra.mxu0 %v467
        %481 = vmatpush.bf16.msra.mxu0 %v466
        %482 = vmatpush.bf16.msra.mxu0 %v465
        %483 = vmatpush.bf16.msra.mxu0 %v464
        %484 = vmatpush.bf16.msra.mxu0 %v463
        %485 = vmatpush.bf16.msra.mxu0 %v462
        %486 = vmatmul.bf16.gmra.mxu0 %v409
        %v487 = vpop.f32.mrf.mxu0
        %v488 = vadd.f32 %v428, %v487
        %v489 = vpop.f32.mrf.mxu0
        %490 = vdwg.mxu0
        %491 = vst [vmem:[%s294] sm:$0xff] %v488
        %p492 = scmp.lt.s32.totalorder %s22, 1
        %s493 = scalar_select %p492, %s22, 1
        %p494 = scmp.lt.s32.totalorder %s23, 0
        %s495 = scalar_select %p494, %s23, 0
        %s496 = sadd.s32 %s495, %s493
        %s497 = smul.addr %s496, 8
        %s498 = scalar_lea.vmem %s5, %s497
        // Predicated region
        $region53: #{_mlp_forward_padded.1} parent=39 // pred_check
          %p499 = pneg %p170
        $region54: #{_mlp_forward_padded.1} parent=39 // pred_check_branch
          %501 = sbr.rel (%p499) target = $region56
        $region55: #{_mlp_forward_padded.1} parent=39 // pred_region
          _
        $region56: #{_mlp_forward_padded.1} parent=39 // pred_fallthru
          _
      $region40: #{_mlp_forward_padded.1} parent=5 // pred_fallthru
        _
      %p502 = scmp.le.s32.totalorder 2, %s13
      // Predicated region
      $region57: #{_mlp_forward_padded.1} parent=5 // pred_check
        %p503 = pneg %p502
      $region58: #{_mlp_forward_padded.1} parent=5 // pred_check_branch
        %505 = sbr.rel (%p503) target = $region60
      $region59: #{_mlp_forward_padded.1} parent=5 // pred_region
        %s506 = ssub.s32 %s13, 2
        // Predicated region
        $region61: #{_mlp_forward_padded.1} parent=59 // pred_check
          %p507 = pneg %p176
        $region62: #{_mlp_forward_padded.1} parent=59 // pred_check_branch
          %509 = sbr.rel (%p507) target = $region64
        $region63: #{_mlp_forward_padded.1} parent=59 // pred_region
          %p510 = scmp.lt.s32.totalorder %s24, 1
          %s511 = scalar_select %p510, %s24, 1
          %p512 = scmp.lt.s32.totalorder %s25, 0
          %s513 = scalar_select %p512, %s25, 0
          %s514 = sadd.s32 %s513, %s511
          %s515 = smul.addr %s514, 8
          %s516 = scalar_lea.vmem %s5, %s515
        $region64: #{_mlp_forward_padded.1} parent=59 // pred_fallthru
          _
      $region60: #{_mlp_forward_padded.1} parent=5 // pred_fallthru
        _
    $region6: #{_mlp_forward_padded.1} parent=1 // loop_footer
      %s17 = sadd.s32 1, %s13
    $region7: #{_mlp_forward_padded.1} parent=1 // loop_footer_branch
      %12 = sbr.rel target = $region3
    $region8: #{_mlp_forward_padded.1} parent=1 // loop_exit
      _
    %517 = vsyncpa [#allocation4], 1
    %s518 = scalar_lea.sflag [#allocation4], 1
    %519 = vsyncpa %s518, 1
    %520 = vsyncpa [#allocation6], 1

</llo_original>
